<compile_context>
chip_gen: v6e
topology: v6e:2x2x1
jax: 0.10.0
libtpu: 0.0.40
codegen_flags: <defaults>
</compile_context>

<pallas_src>
import jax
import jax.numpy as jnp
from jax import lax
from jax.experimental import pallas as pl
from jax.experimental.pallas import tpu as pltpu


# ---------------------------------------------------------------------------
# VMEM budgeting
# ---------------------------------------------------------------------------
def _vmem_capacity_bytes():
    try:
        return int(pltpu.get_tpu_info().vmem_capacity_bytes)
    except Exception:
        return 64 * 1024 * 1024  # conservative: v7x per-core VMEM


def _step_budget_bytes(vmem_cap):
    # Combined (input + output) tile bytes per grid step.  The pipeline
    # double-buffers (~2x), so stay well under the scoped limit requested.
    return max(2 * 1024 * 1024, min(vmem_cap // 8, 12 * 1024 * 1024))


def _pick_nb(N, per_row_bytes, budget):
    """Batch rows per grid step for the lane-flattened (fast) path.

    Returns None if even the smallest legal block blows the budget
    (caller falls back to spatial tiling)."""
    target = max(1, pl.cdiv(N, 4))  # >= 4 grid steps (>= 2 per v7x TC) when N allows
    nb = max(1, min(budget // max(per_row_bytes, 1), target))
    if nb < N:
        nb = max(8, (nb // 8) * 8)  # sublane block dim: multiple of 8 (or == N)
    nb = min(nb, N)
    if nb * per_row_bytes > 2 * budget:
        return None
    return nb


def _pick_thw(HW, per_lane_bytes, budget):
    """Spatial (lane) tile width for the fallback path."""
    if HW <= 128:
        return HW
    t = (budget // max(per_lane_bytes, 1)) // 128 * 128
    t = max(128, t)
    t = min(t, max(128, (HW // 128) * 128))
    return t


# ---------------------------------------------------------------------------
# Kernels
# ---------------------------------------------------------------------------
def _make_flat_kernel(HW):
    two_hw = 2 * HW

    def kernel(pos_ref, x_ref, o_ref):
        # pos_ref: (1, 2*HW) f32 ; x_ref: (nb, C*HW) ; o_ref: (nb, (C+2)*HW) f32
        nb = o_ref.shape[0]
        # pos prefix: sublane broadcast only (no per-row recomputation).
        o_ref[:, :two_hw] = jnp.broadcast_to(pos_ref[...], (nb, two_hw))
        # Bulk copy of x at lane offset 2*HW (multiple of 128 -> unmasked vst).
        o_ref[:, two_hw:] = x_ref[...].astype(o_ref.dtype)

    return kernel


def _spatial_kernel(pos_ref, x_ref, o_ref):
    # pos_ref: (1, 2, t) f32 ; x_ref: (1, C, t) ; o_ref: (1, C+2, t) f32
    o_ref[:, 0:2, :] = pos_ref[...]
    o_ref[:, 2:, :] = x_ref[...].astype(o_ref.dtype)


# ---------------------------------------------------------------------------
# Wrapper
# ---------------------------------------------------------------------------
def _positional_grid(H, W):
    # Mirrors torch: stack(meshgrid(arange(H), arange(W))), /= max(pos) + 1e-12.
    row = lax.broadcasted_iota(jnp.float32, (H, W), 0)
    col = lax.broadcasted_iota(jnp.float32, (H, W), 1)
    pos = jnp.stack([row, col], axis=0)  # (2, H, W)
    return pos / (jnp.max(pos) + 1e-12)


def positional_encoding(x):
    """Pallas equivalent of PositionalEncoding.forward for NCHW input."""
    N, C, H, W = x.shape
    HW = H * W
    out_dtype = jnp.float32  # clamp: never f64 (torch reference is f32)
    if x.dtype == jnp.float64:
        x = x.astype(jnp.float32)
    in_isz = jnp.dtype(x.dtype).itemsize
    out_isz = 4

    pos = _positional_grid(H, W)  # (2, H, W) f32, tiny

    vmem_cap = _vmem_capacity_bytes()
    budget = _step_budget_bytes(vmem_cap)

    total_bytes = int(N * C * HW * in_isz + N * (C + 2) * HW * out_isz + 2 * HW * 4)
    cost = pl.CostEstimate(flops=0, transcendentals=0, bytes_accessed=total_bytes)

    per_row = C * HW * in_isz + (C + 2) * HW * out_isz
    nb = _pick_nb(N, per_row, budget) if HW % 128 == 0 else None

    if nb is not None:
        # ------- fast path: lane-flattened channels, grid over batch --------
        two_hw = 2 * HW
        x2 = x.reshape(N, C * HW)
        pos2 = pos.reshape(1, two_hw)
        grid = (pl.cdiv(N, nb),)
        step_bytes = nb * per_row + two_hw * 4
        vmem_limit = int(min(vmem_cap,
                             max(32 * 1024 * 1024, 2 * step_bytes + (4 << 20))))
        out2 = pl.pallas_call(
            _make_flat_kernel(HW),
            out_shape=jax.ShapeDtypeStruct((N, (C + 2) * HW), out_dtype),
            grid_spec=pltpu.PrefetchScalarGridSpec(
                num_scalar_prefetch=0,
                grid=grid,
                in_specs=[
                    pl.BlockSpec((1, two_hw), lambda n: (0, 0)),   # pos: resident
                    pl.BlockSpec((nb, C * HW), lambda n: (n, 0)),
                ],
                out_specs=pl.BlockSpec((nb, (C + 2) * HW), lambda n: (n, 0)),
            ),
            compiler_params=pltpu.CompilerParams(
                dimension_semantics=("parallel",),
                vmem_limit_bytes=vmem_limit,
            ),
            cost_estimate=cost,
        )(pos2, x2)
        return out2.reshape(N, C + 2, H, W)

    # ------- fallback: (N, C, HW) layout, grid over (batch, spatial) --------
    per_lane = C * in_isz + (C + 2) * out_isz + 2 * 4
    t = _pick_thw(HW, per_lane, budget)
    x3 = x.reshape(N, C, HW)
    pos3 = pos.reshape(1, 2, HW)
    grid = (N, pl.cdiv(HW, t))
    step_bytes = t * per_lane
    vmem_limit = int(min(vmem_cap,
                         max(32 * 1024 * 1024, 2 * step_bytes + (4 << 20))))
    out3 = pl.pallas_call(
        _spatial_kernel,
        out_shape=jax.ShapeDtypeStruct((N, C + 2, HW), out_dtype),
        grid_spec=pltpu.PrefetchScalarGridSpec(
            num_scalar_prefetch=0,
            grid=grid,
            in_specs=[
                pl.BlockSpec((1, 2, t), lambda n, s: (0, 0, s)),
                pl.BlockSpec((1, C, t), lambda n, s: (n, 0, s)),
            ],
            out_specs=pl.BlockSpec((1, C + 2, t), lambda n, s: (n, 0, s)),
        ),
        compiler_params=pltpu.CompilerParams(
            dimension_semantics=("parallel", "parallel"),
            vmem_limit_bytes=vmem_limit,
        ),
        cost_estimate=cost,
    )(pos3, x3)
    return out3.reshape(N, C + 2, H, W)


# ---------------------------------------------------------------------------
# Pure-JAX reference mirroring the PyTorch module
# ---------------------------------------------------------------------------
def _reference(x):
    N, C, H, W = x.shape
    row = lax.broadcasted_iota(jnp.float32, (H, W), 0)
    col = lax.broadcasted_iota(jnp.float32, (H, W), 1)
    pos = jnp.stack([row, col], axis=0)
    pos = pos / (jnp.max(pos) + 1e-12)
    pos = jnp.broadcast_to(pos[None], (N, 2, H, W))
    return jnp.concatenate([pos, x.astype(pos.dtype)], axis=1)


if __name__ == "__main__":
    key = jax.random.PRNGKey(0)
    k0, k1 = jax.random.split(key)

    # Main case (fast, lane-flattened path): NCHW, HW % 128 == 0.
    x = jax.random.normal(k0, (2, 4, 16, 16), dtype=jnp.float32)
    out = jax.block_until_ready(positional_encoding(x))
    ref = _reference(x)
    assert out.shape == (2, 6, 16, 16), out.shape
    assert out.dtype == jnp.float32, out.dtype
    assert jnp.allclose(out, ref, atol=1e-6, rtol=1e-6), "mismatch (fast path)"

    # Odd spatial size -> exercises the spatial-tiled fallback path.
    x_odd = jax.random.normal(k1, (2, 3, 5, 7), dtype=jnp.float32)
    out_odd = jax.block_until_ready(positional_encoding(x_odd))
    ref_odd = _reference(x_odd)
    assert out_odd.shape == (2, 5, 5, 7), out_odd.shape
    assert jnp.allclose(out_odd, ref_odd, atol=1e-6, rtol=1e-6), "mismatch (fallback)"

    print("KERNEL_OK")
</pallas_src>

<mosaic_0001>
module attributes {stable_mosaic.version = 11 : i64} {
  func.func @kernel(%arg0: i32, %arg1: memref<1x512xf32, #tpu.memory_space<vmem>>, %arg2: memref<2x1024xf32, #tpu.memory_space<vmem>>, %arg3: memref<2x1536xf32, #tpu.memory_space<vmem>>) attributes {dimension_semantics = [#tpu.dimension_semantics<parallel>], iteration_bounds = array<i64: 1>, scalar_prefetch = 0 : i64, scratch_operands = 0 : i64, tpu.core_type = #tpu.core_type<tc>, window_params = [{pipeline_mode = #tpu.pipeline_mode<synchronous>, transform_indices = @transform_0, window_bounds = array<i64: 1, 512>}, {transform_indices = @transform_1, window_bounds = array<i64: 2, 1024>}, {transform_indices = @transform_2, window_bounds = array<i64: 2, 1536>}]} {
    %c0 = arith.constant 0 : index
    %c0_0 = arith.constant 0 : index
    %0 = vector.load %arg1[%c0, %c0_0] : memref<1x512xf32, #tpu.memory_space<vmem>>, vector<1x512xf32>
    %1 = vector.shape_cast %0 : vector<1x512xf32> to vector<1x512xf32>
    %2 = vector.broadcast %1 : vector<1x512xf32> to vector<2x512xf32>
    %c0_1 = arith.constant 0 : index
    %c0_2 = arith.constant 0 : index
    %3 = vector.load %arg3[%c0_1, %c0_2] : memref<2x1536xf32, #tpu.memory_space<vmem>>, vector<2x512xf32>
    tpu.vector_store %arg3[%c0_1, %c0_2], %2 {strides = array<i32>} : memref<2x1536xf32, #tpu.memory_space<vmem>>, vector<2x512xf32>,
    %c0_3 = arith.constant 0 : index
    %c0_4 = arith.constant 0 : index
    %4 = vector.load %arg2[%c0_3, %c0_4] : memref<2x1024xf32, #tpu.memory_space<vmem>>, vector<2x1024xf32>
    %c0_5 = arith.constant 0 : index
    %c512 = arith.constant 512 : index
    %5 = vector.load %arg3[%c0_5, %c512] : memref<2x1536xf32, #tpu.memory_space<vmem>>, vector<2x1024xf32>
    tpu.vector_store %arg3[%c0_5, %c512], %4 {strides = array<i32>} : memref<2x1536xf32, #tpu.memory_space<vmem>>, vector<2x1024xf32>,
    return
  }
  func.func @transform_0(%arg0: i32) -> (i32, i32) {
    %c0_i32 = arith.constant 0 : i32
    %c0_i32_0 = arith.constant 0 : i32
    %c0_i32_1 = arith.constant 0 : i32
    return %c0_i32, %c0_i32_0 : i32, i32
  }
  func.func @transform_1(%arg0: i32) -> (i32, i32) {
    %c0_i32 = arith.constant 0 : i32
    %c0_i32_0 = arith.constant 0 : i32
    return %arg0, %c0_i32 : i32, i32
  }
  func.func @transform_2(%arg0: i32) -> (i32, i32) {
    %c0_i32 = arith.constant 0 : i32
    %c0_i32_0 = arith.constant 0 : i32
    return %arg0, %c0_i32 : i32, i32
  }
}

</mosaic_0001>

<llo_original>
// kernel: tpu_custom_call.1
$region0: #{tpu_custom_call.1}
  #allocation0 [shape = 'u32[]', space=smem, size = 0x4, offset = 0x4, fixed_abs, tag = 'smem constant byte address 0x4 - core index']
  #allocation1 [shape = 'u32[144,128]{1,0:T(1,128)}', space=vmem, size = 0x12000, scoped, tag = 'internal scratch']
  %s0 = inlined_call_operand.hbm [shape: f32[1,512], index: 0, kind: input, shape index: {}]
  %s1 = inlined_call_operand.hbm [shape: f32[2,1024], index: 1, kind: input, shape index: {}]
  %s2 = inlined_call_operand.hbm [shape: f32[2,1536], index: 2, kind: output, shape index: {}]
  %s3 = sld [smem:[#allocation0]]
  $region26: #{tpu_custom_call.1} parent=0
    _
  %s5 = ssub.s32 1, %s3
  %s6 = scalar_select 0, %s5, %s3
  $region1: #{tpu_custom_call.1} parent=0
    #allocation2 [shape = 'u8[2048]{0}', space=vmem, size = 0x800, scoped, tag = 'input window, operand 0, single buffered']
    #allocation3 [shape = 's32[1]{0}', space=sflag, size = 0x4, scoped, tag = 'scoped memory for tpu_custom_call.1']
    #allocation4 [shape = 's32[1]{0}', space=sflag, size = 0x4, scoped, tag = 'scoped memory for tpu_custom_call.1']
    #allocation5 [shape = 'u8[8192]{0}', space=vmem, size = 0x2000, scoped, tag = 'input window, operand 1, single buffered']
    #allocation6 [shape = 's32[1]{0}', space=sflag, size = 0x4, scoped, tag = 'scoped memory for tpu_custom_call.1']
    #allocation7 [shape = 'u8[12288]{0}', space=vmem, size = 0x3000, scoped, tag = 'output window, operand 0, single buffered']
    %7 = vsyncpa [#allocation3], 0
    %8 = vsyncpa [#allocation6], 0
    %9 = vsyncpa [#allocation4], 0
    // Predicated region
    $region2: #{tpu_custom_call.1} parent=1 // pred_check
      _
    $region3: #{tpu_custom_call.1} parent=1 // pred_check_branch
      %11 = sbr.rel (0) target = $region5
    $region4: #{tpu_custom_call.1} parent=1 // pred_region
      %s13 = ssub.s32 64, 64
      %14 = vsyncadd [#allocation3], %s13
      %s16 = sshll.u32 [#allocation2], 4
      %s17 = int_to_ptr.vmem [resolvable:$true] %s16
      %19 = dma.hbm_to_vmem [thread:$0]  %s0, 64, %s17, [#allocation3]
    $region5: #{tpu_custom_call.1} parent=1 // pred_fallthru
      _
    // Predicated region
    $region6: #{tpu_custom_call.1} parent=1 // pred_check
      _
    $region7: #{tpu_custom_call.1} parent=1 // pred_check_branch
      %21 = sbr.rel (0) target = $region9
    $region8: #{tpu_custom_call.1} parent=1 // pred_region
      %s23 = ssub.s32 256, 256
      %24 = vsyncadd [#allocation6], %s23
      %s26 = sshll.u32 [#allocation5], 4
      %s27 = int_to_ptr.vmem [resolvable:$true] %s26
      %29 = dma.hbm_to_vmem [thread:$0]  %s1, 256, %s27, [#allocation6]
    $region9: #{tpu_custom_call.1} parent=1 // pred_fallthru
      _
    // Predicated region
    $region10: #{tpu_custom_call.1} parent=1 // pred_check
      _
    $region11: #{tpu_custom_call.1} parent=1 // pred_check_branch
      %31 = sbr.rel (0) target = $region13
    $region12: #{tpu_custom_call.1} parent=1 // pred_region
      %32 = dma.done [#allocation3], 64
    $region13: #{tpu_custom_call.1} parent=1 // pred_fallthru
      _
    // Predicated region
    $region14: #{tpu_custom_call.1} parent=1 // pred_check
      _
    $region15: #{tpu_custom_call.1} parent=1 // pred_check_branch
      %34 = sbr.rel (0) target = $region17
    $region16: #{tpu_custom_call.1} parent=1 // pred_region
      %35 = dma.done [#allocation6], 256
    $region17: #{tpu_custom_call.1} parent=1 // pred_fallthru
      _
    %v36 = vld [vmem:[#allocation2] sm:$0xf]
    %v38 = vlaneseq
    %v39 = vshrl.u32 %v38, 7
    %v40 = vsub.s32 0, %v39
    %v41 = vrot.slane %v36, %v40
    %v42 = vlaneseq
    %v43 = vshrl.u32 %v42, 7
    %v44 = vsub.s32 1, %v43
    %v45 = vrot.slane %v36, %v44
    %v46 = vlaneseq
    %v47 = vshrl.u32 %v46, 7
    %v48 = vsub.s32 2, %v47
    %v49 = vrot.slane %v36, %v48
    %v50 = vlaneseq
    %v51 = vshrl.u32 %v50, 7
    %v52 = vsub.s32 3, %v51
    %v53 = vrot.slane %v36, %v52
    %v54 = vcombine.low %v41, %v45
    %v55 = vcombine.low %v49, %v53
    %v57 = vunpack.c.l.s4 1983009808
    %v58 = vunpack.c.0.s8 %v57
    %v59 = vlaneseq
    %v60 = vshrl.u32 %v59, 7
    %v61 = vsub.s32 %v58, %v60
    %v62 = vrot.slane %v54, %v61
    %v64 = vunpack.c.l.s4 1983009808
    %v65 = vunpack.c.0.s8 %v64
    %v66 = vlaneseq
    %v67 = vshrl.u32 %v66, 7
    %v68 = vsub.s32 %v65, %v67
    %v69 = vrot.slane %v55, %v68
    %v70 = vcombine.low %v62, %v69
    %72 = vst [vmem:[#allocation7] sm:$0xff] %v70
    %v73 = vld [vmem:[#allocation5] sm:$0xff]
    %v74 = vld [vmem:[#allocation5 + $0x8] sm:$0xff]
    %75 = vst [vmem:[#allocation7 + $0x8] sm:$0xff] %v73
    %76 = vst [vmem:[#allocation7 + $0x10] sm:$0xff] %v74
    // Predicated region
    $region18: #{tpu_custom_call.1} parent=1 // pred_check
      _
    $region19: #{tpu_custom_call.1} parent=1 // pred_check_branch
      %78 = sbr.rel (0) target = $region21
    $region20: #{tpu_custom_call.1} parent=1 // pred_region
      %s80 = ssub.s32 384, 384
      %81 = vsyncadd [#allocation4], %s80
      %s83 = sshll.u32 [#allocation7], 4
      %s84 = int_to_ptr.vmem [resolvable:$true] %s83
      %86 = dma.vmem_to_hbm [thread:$0]  %s84, 384, %s2, [#allocation4]
    $region21: #{tpu_custom_call.1} parent=1 // pred_fallthru
      _
    // Predicated region
    $region22: #{tpu_custom_call.1} parent=1 // pred_check
      _
    $region23: #{tpu_custom_call.1} parent=1 // pred_check_branch
      %88 = sbr.rel (0) target = $region25
    $region24: #{tpu_custom_call.1} parent=1 // pred_region
      %89 = dma.done [#allocation4], 384
    $region25: #{tpu_custom_call.1} parent=1 // pred_fallthru
      _
    %90 = vsyncpa [#allocation3], 1
    %91 = vsyncpa [#allocation6], 1
    %92 = vsyncpa [#allocation4], 1

</llo_original>
